<compile_context>
chip_gen: v6e
topology: v6e:2x2x1
jax: 0.10.0
libtpu: 0.0.40
codegen_flags: <defaults>
</compile_context>

<pallas_src>
import jax
import jax.numpy as jnp
from jax.experimental import pallas as pl
from jax.experimental.pallas import tpu as pltpu


def _round_up(x: int, m: int) -> int:
    return (x + m - 1) // m * m


def _vmem_capacity_bytes() -> int:
    try:
        return int(pltpu.get_tpu_info().vmem_capacity_bytes)
    except Exception:
        # Conservative fallback (assume the smallest, v7x-like, VMEM).
        return 64 * 1024 * 1024


def _normalize_kernel(x_ref, o_ref):
    """x_normalized = x / (||x||_2 + 1e-5), norm math in f32."""
    xf = x_ref[...].astype(jnp.float32)                       # (TM, K)
    ss = jnp.sum(xf * xf, axis=1, keepdims=True)              # (TM, 1)
    # Exact reciprocal (not approx) so the torch "+1e-5" eps semantics hold
    # within the 1e-4 test tolerance.
    inv = pl.reciprocal(jnp.sqrt(ss) + 1e-5, approx=False)
    o_ref[...] = (xf * inv).astype(o_ref.dtype)


def _scores_kernel(xn_ref, v_ref, s_ref, o_ref):
    """scores_tile = (xn @ v.T) * col_scale  -- pure MXU matmul + lane-wise scale."""
    cos = jax.lax.dot_general(
        xn_ref[...], v_ref[...],
        dimension_numbers=(((1,), (1,)), ((), ())),            # contract K with K (trans-B)
        preferred_element_type=jnp.float32,
    )                                                          # (TM, TN) f32
    o_ref[...] = (cos * s_ref[...]).astype(o_ref.dtype)


def dist_linear(x, weight_v, weight_g, num_labels, *,
                block_m=None, block_n=None, matmul_dtype=None):
    """x: (B, dim); weight_v: (num_labels, dim); weight_g: (num_labels, 1) -> (B, num_labels)."""
    scale = 2.0 if num_labels <= 200 else 10.0
    B, dim = x.shape
    N, dim_v = weight_v.shape
    assert dim == dim_v and N == num_labels

    mm_dtype = jnp.dtype(matmul_dtype) if matmul_dtype is not None else jnp.dtype(x.dtype)
    mm_itemsize = mm_dtype.itemsize
    out_itemsize = jnp.dtype(x.dtype).itemsize
    # Packed-sublane granule for the matmul dtype: f32 -> 8, bf16 -> 16, int8/fp8 -> 32.
    granule = max(8, 32 // mm_itemsize)

    # ---- Generation-aware tile / VMEM defaults. ----
    vmem_cap = _vmem_capacity_bytes()
    if vmem_cap <= 64 * 1024 * 1024:          # v7x-class part: 64 MiB VMEM / TensorCore
        vmem_limit = 40 * 1024 * 1024
        def_bm, def_bn = 256, 256
    else:                                     # v5e / v6e: 128 MiB VMEM
        vmem_limit = 80 * 1024 * 1024
        def_bm, def_bn = 512, 1024
    bm = block_m if block_m is not None else def_bm
    bn = block_n if block_n is not None else def_bn

    tm = _round_up(min(bm, _round_up(B, granule)), granule)
    tn = _round_up(min(bn, _round_up(N, 128)), 128)

    def footprint(tm_, tn_):
        return (2 * tm_ * dim * mm_itemsize        # double-buffered xn tiles
                + 2 * tn_ * dim * mm_itemsize      # double-buffered weight tiles
                + 2 * tm_ * tn_ * out_itemsize     # double-buffered output tiles
                + 2 * tn_ * 4)                     # col_scale tiles

    budget = int(vmem_limit * 0.85)
    while footprint(tm, tn) > budget and tn > 128:
        tn = max(128, (tn // 2) // 128 * 128)
    while footprint(tm, tn) > budget and tm > granule:
        tm = max(granule, (tm // 2) // granule * granule)
    # TODO(synk): for very large feature dims (dim >~ 6-8K on v7x) a K grid axis with
    # an f32 accumulator would be needed to stay inside VMEM; not implemented here.

    Bp = _round_up(B, tm)
    Np = _round_up(N, tn)
    nb, nl = Bp // tm, Np // tn

    # Zero-pad to tile multiples; padded rows/cols come out exactly zero and are sliced off.
    x_p = jnp.pad(x, ((0, Bp - B), (0, 0)))
    v_p = jnp.pad(weight_v, ((0, Np - N), (0, 0))).astype(mm_dtype)

    # Hoisted WeightNorm column scale: scale_factor * g / ||v_row||, (1, Np) f32 lane-major.
    # Computed on the unpadded rows (no 0/0), then zero-padded.
    v_norm = jnp.sqrt(jnp.sum(weight_v.astype(jnp.float32) ** 2, axis=1))        # (N,)
    col_scale = scale * weight_g.reshape(N).astype(jnp.float32) / v_norm          # (N,)
    col_scale_p = jnp.pad(col_scale.reshape(1, N), ((0, 0), (0, Np - N)))          # (1, Np)

    # ---- Stage 1: normalize x (tiny, batch-parallel). ----
    xn_p = pl.pallas_call(
        _normalize_kernel,
        out_shape=jax.ShapeDtypeStruct((Bp, dim), mm_dtype),
        grid_spec=pltpu.PrefetchScalarGridSpec(
            num_scalar_prefetch=0,
            grid=(nb,),
            in_specs=[pl.BlockSpec((tm, dim), lambda i: (i, 0))],
            out_specs=pl.BlockSpec((tm, dim), lambda i: (i, 0)),
        ),
        compiler_params=pltpu.CompilerParams(
            dimension_semantics=("parallel",),
            vmem_limit_bytes=vmem_limit,
        ),
    )(x_p)

    # ---- Stage 2: scaled cosine scores, fully parallel 2D grid. ----
    # Grid order chosen so the larger operand is read from HBM once; the smaller streams.
    traffic_batch_outer = Bp * dim + nb * Np * dim   # weights re-streamed per batch tile
    traffic_label_outer = Np * dim + nl * Bp * dim   # xn re-streamed per label tile
    label_outer = traffic_label_outer < traffic_batch_outer

    if label_outer:
        grid = (nl, nb)
        x_map = lambda j, i: (i, 0)
        v_map = lambda j, i: (j, 0)
        s_map = lambda j, i: (0, j)
        o_map = lambda j, i: (i, j)
    else:
        grid = (nb, nl)
        x_map = lambda i, j: (i, 0)
        v_map = lambda i, j: (j, 0)
        s_map = lambda i, j: (0, j)
        o_map = lambda i, j: (i, j)

    out_p = pl.pallas_call(
        _scores_kernel,
        out_shape=jax.ShapeDtypeStruct((Bp, Np), x.dtype),
        grid_spec=pltpu.PrefetchScalarGridSpec(
            num_scalar_prefetch=0,
            grid=grid,
            in_specs=[
                pl.BlockSpec((tm, dim), x_map),        # normalized x tile
                pl.BlockSpec((tn, dim), v_map),        # raw weight tile (native dtype)
                pl.BlockSpec((1, tn), s_map),          # hoisted col_scale, lane-major
            ],
            out_specs=pl.BlockSpec((tm, tn), o_map),   # lane-dense output tile
        ),
        compiler_params=pltpu.CompilerParams(
            # No cross-step dependency remains -> both axes parallel (megacore shardable).
            dimension_semantics=("parallel", "parallel"),
            vmem_limit_bytes=vmem_limit,
        ),
    )(xn_p, v_p, col_scale_p)

    return out_p[:B, :N]


def reference(x, weight_v, weight_g, num_labels):
    scale = 2.0 if num_labels <= 200 else 10.0
    x_norm = jnp.linalg.norm(x, axis=1, keepdims=True)
    x_n = x / (x_norm + 1e-5)
    v_norm = jnp.linalg.norm(weight_v, axis=1, keepdims=True)
    w = weight_g * weight_v / v_norm
    return scale * (x_n @ w.T)


if __name__ == "__main__":
    B, dim, num_labels = 8, 32, 16  # num_labels <= 200 -> scale_factor = 2

    key = jax.random.PRNGKey(0)
    kx, kv = jax.random.split(key)

    x = jax.random.normal(kx, (B, dim), dtype=jnp.float32)
    # Deterministic "Linear" weight init (synthetic), mimicking uniform(-1/sqrt(dim), 1/sqrt(dim)).
    bound = 1.0 / (dim ** 0.5)
    weight_v = jax.random.uniform(kv, (num_labels, dim), dtype=jnp.float32,
                                  minval=-bound, maxval=bound)
    # WeightNorm init: g = ||v||_2 per output row (dim=0), shape (num_labels, 1).
    weight_g = jnp.linalg.norm(weight_v, axis=1, keepdims=True)

    out = dist_linear(x, weight_v, weight_g, num_labels)
    out = jax.block_until_ready(out)

    ref = reference(x, weight_v, weight_g, num_labels)
    assert out.shape == (B, num_labels)
    assert jnp.allclose(out, ref, atol=1e-4, rtol=1e-4), "mismatch vs reference"

    print("KERNEL_OK")
</pallas_src>

<mosaic_0001>
module attributes {stable_mosaic.version = 11 : i64} {
  func.func @_normalize_kernel(%arg0: i32, %arg1: memref<8x32xf32, #tpu.memory_space<vmem>>, %arg2: memref<8x32xf32, #tpu.memory_space<vmem>>) attributes {dimension_semantics = [#tpu.dimension_semantics<parallel>], iteration_bounds = array<i64: 1>, scalar_prefetch = 0 : i64, scratch_operands = 0 : i64, tpu.core_type = #tpu.core_type<tc>, window_params = [{transform_indices = @transform_0, window_bounds = array<i64: 8, 32>}, {transform_indices = @transform_1, window_bounds = array<i64: 8, 32>}]} {
    %c0 = arith.constant 0 : index
    %c0_0 = arith.constant 0 : index
    %0 = vector.load %arg1[%c0, %c0_0] : memref<8x32xf32, #tpu.memory_space<vmem>>, vector<8x32xf32>
    %1 = arith.mulf %0, %0 : vector<8x32xf32>
    %cst = arith.constant dense<0.000000e+00> : vector<8xf32>
    %2 = vector.multi_reduction <add>, %1, %cst [1] : vector<8x32xf32> to vector<8xf32>
    %3 = vector.shape_cast %2 : vector<8xf32> to vector<8x1xf32>
    %4 = math.sqrt %3 : vector<8x1xf32>
    %cst_1 = arith.constant 9.99999974E-6 : f32
    %5 = vector.broadcast %cst_1 : f32 to vector<8x1xf32>
    %6 = arith.addf %4, %5 : vector<8x1xf32>
    %7 = tpu.reciprocal %6 : vector<8x1xf32> -> vector<8x1xf32>
    %8 = vector.broadcast %7 : vector<8x1xf32> to vector<8x32xf32>
    %9 = arith.mulf %0, %8 : vector<8x32xf32>
    %c0_2 = arith.constant 0 : index
    %c0_3 = arith.constant 0 : index
    %10 = vector.load %arg2[%c0_2, %c0_3] : memref<8x32xf32, #tpu.memory_space<vmem>>, vector<8x32xf32>
    tpu.vector_store %arg2[%c0_2, %c0_3], %9 {strides = array<i32>} : memref<8x32xf32, #tpu.memory_space<vmem>>, vector<8x32xf32>,
    return
  }
  func.func @transform_0(%arg0: i32) -> (i32, i32) {
    %c0_i32 = arith.constant 0 : i32
    %c0_i32_0 = arith.constant 0 : i32
    return %arg0, %c0_i32 : i32, i32
  }
  func.func @transform_1(%arg0: i32) -> (i32, i32) {
    %c0_i32 = arith.constant 0 : i32
    %c0_i32_0 = arith.constant 0 : i32
    return %arg0, %c0_i32 : i32, i32
  }
}

</mosaic_0001>

<llo_original>
// kernel: tpu_custom_call.1
$region0: #{tpu_custom_call.1}
  #allocation0 [shape = 'u32[]', space=smem, size = 0x4, offset = 0x4, fixed_abs, tag = 'smem constant byte address 0x4 - core index']
  #allocation1 [shape = 'u32[144,128]{1,0:T(1,128)}', space=vmem, size = 0x12000, scoped, tag = 'internal scratch']
  %s0 = inlined_call_operand.hbm [shape: f32[8,32], index: 0, kind: input, shape index: {}]
  %s1 = inlined_call_operand.hbm [shape: f32[8,32], index: 1, kind: output, shape index: {}]
  %s2 = sld [smem:[#allocation0]]
  $region18: #{tpu_custom_call.1} parent=0
    _
  %s4 = ssub.s32 1, %s2
  %s5 = scalar_select 0, %s4, %s2
  $region1: #{tpu_custom_call.1} parent=0
    #allocation2 [shape = 'u8[4096]{0}', space=vmem, size = 0x1000, scoped, tag = 'input window, operand 0, single buffered']
    #allocation3 [shape = 's32[1]{0}', space=sflag, size = 0x4, scoped, tag = 'scoped memory for tpu_custom_call.1']
    #allocation4 [shape = 's32[1]{0}', space=sflag, size = 0x4, scoped, tag = 'scoped memory for tpu_custom_call.1']
    #allocation5 [shape = 'u8[4096]{0}', space=vmem, size = 0x1000, scoped, tag = 'output window, operand 0, single buffered']
    %6 = vsyncpa [#allocation3], 0
    %7 = vsyncpa [#allocation4], 0
    // Predicated region
    $region2: #{tpu_custom_call.1} parent=1 // pred_check
      _
    $region3: #{tpu_custom_call.1} parent=1 // pred_check_branch
      %9 = sbr.rel (0) target = $region5
    $region4: #{tpu_custom_call.1} parent=1 // pred_region
      %s11 = ssub.s32 128, 128
      %12 = vsyncadd [#allocation3], %s11
      %s14 = sshll.u32 [#allocation2], 4
      %s15 = int_to_ptr.vmem [resolvable:$true] %s14
      %17 = dma.hbm_to_vmem [thread:$0]  %s0, 128, %s15, [#allocation3]
    $region5: #{tpu_custom_call.1} parent=1 // pred_fallthru
      _
    // Predicated region
    $region6: #{tpu_custom_call.1} parent=1 // pred_check
      _
    $region7: #{tpu_custom_call.1} parent=1 // pred_check_branch
      %19 = sbr.rel (0) target = $region9
    $region8: #{tpu_custom_call.1} parent=1 // pred_region
      %20 = dma.done [#allocation3], 128
    $region9: #{tpu_custom_call.1} parent=1 // pred_fallthru
      _
    %v21 = vld [vmem:[#allocation2] sm:$0xff]
    %v22 = vmul.f32 %v21, %v21
    %vm23 = vcmask 261120
    %v24 = vsel %vm23, %v22, 0.0
    %25 = vadd.xlane.f32.xlu0 %v24
    %v26 = vpop.xlane.xlu0 %25
    %v27 = vrsqrt.pop %v26
    %v28 = vmul.f32 %v26, %v27
    %vm29 = vcmp.eq.f32.partialorder %v26, inf
    %v30 = vsel %vm29, %v26, %v28
    %vm31 = vcmp.eq.f32.partialorder %v26, 0.0
    %v32 = vand.u32 %v26, 2147483648
    %v33 = vsel %vm31, %v32, %v30
    %v34 = vadd.f32 %v33, 1e-05
    %v35 = vrcp.pop %v34
    %v36 = vmul.f32 %v21, %v35
    %37 = vst.msk [vmem:[#allocation5] sm:$0xff] %vm23, %v36
    // Predicated region
    $region10: #{tpu_custom_call.1} parent=1 // pred_check
      _
    $region11: #{tpu_custom_call.1} parent=1 // pred_check_branch
      %39 = sbr.rel (0) target = $region13
    $region12: #{tpu_custom_call.1} parent=1 // pred_region
      %s41 = ssub.s32 128, 128
      %42 = vsyncadd [#allocation4], %s41
      %s44 = sshll.u32 [#allocation5], 4
      %s45 = int_to_ptr.vmem [resolvable:$true] %s44
      %47 = dma.vmem_to_hbm [thread:$0]  %s45, 128, %s1, [#allocation4]
    $region13: #{tpu_custom_call.1} parent=1 // pred_fallthru
      _
    // Predicated region
    $region14: #{tpu_custom_call.1} parent=1 // pred_check
      _
    $region15: #{tpu_custom_call.1} parent=1 // pred_check_branch
      %49 = sbr.rel (0) target = $region17
    $region16: #{tpu_custom_call.1} parent=1 // pred_region
      %50 = dma.done [#allocation4], 128
    $region17: #{tpu_custom_call.1} parent=1 // pred_fallthru
      _
    %51 = vsyncpa [#allocation3], 1
    %52 = vsyncpa [#allocation4], 1

</llo_original>
